<compile_context>
chip_gen: v7x
topology: tpu7x:2x2x1
jax: 0.10.0
libtpu: 0.0.40
codegen_flags: <defaults>
</compile_context>

<pallas_src>
import jax
import jax.numpy as jnp
from jax import lax
from jax.experimental import pallas as pl
from jax.experimental.pallas import tpu as pltpu


def _round_up(x, m):
    return ((x + m - 1) // m) * m


def rnn_classifier_kernel(x_ref, wih_ref, whh_ref, b_ref, wfc_ref, bfc_ref,
                          out_ref, h_ref):
    """One grid step processes a chunk of Tc timesteps.

    x_ref  : (Tc*B, E) bf16, time-major rows (row = local_t * B + b)
    wih_ref: (E, H)    bf16  (PyTorch W_ih^T, zero-padded rows)
    whh_ref: (H, H)    bf16  (PyTorch W_hh^T)
    b_ref  : (1, H)    f32   (b_ih + b_hh)
    wfc_ref: (H, O)    bf16  (fc.weight^T, zero-padded cols)
    bfc_ref: (1, O)    f32
    out_ref: (B, O)    f32 logits (written on the last grid step only)
    h_ref  : (B, H)    f32 VMEM scratch, hidden state carried across grid steps
    """
    t = pl.program_id(0)

    @pl.when(t == 0)
    def _init():
        h_ref[...] = jnp.zeros_like(h_ref)

    B, H = h_ref.shape
    tc = x_ref.shape[0] // B

    # Hoisted input projection: a single (Tc*B, E) @ (E, H) MXU call per chunk,
    # bias folded in once instead of per recurrence step.
    xp = (jnp.dot(x_ref[...], wih_ref[...],
                  preferred_element_type=jnp.float32)
          + b_ref[...])                                          # (Tc*B, H) f32

    whh = whh_ref[...]                                           # (H, H) bf16
    h = h_ref[...]                                               # (B, H)  f32
    # Fully-unrolled recurrence (tc is small & static): each step is one
    # (B,H)@(H,H) MXU matmul + add + tanh (EUP) on the serial chain.
    for i in range(tc):
        pre = xp[i * B:(i + 1) * B, :] + jnp.dot(
            h.astype(jnp.bfloat16), whh, preferred_element_type=jnp.float32)
        h = jnp.tanh(pre)
    h_ref[...] = h

    @pl.when(t == pl.num_programs(0) - 1)
    def _finalize():
        logits = (jnp.dot(h.astype(jnp.bfloat16), wfc_ref[...],
                          preferred_element_type=jnp.float32)
                  + bfc_ref[...])
        out_ref[...] = logits.astype(out_ref.dtype)


def rnn_text_classifier(text_ids, params, *, t_chunk=None):
    """text_ids: (B, T) int32 token ids.  Returns logits (B, output_dim)."""
    emb = params["embedding"]                # (V, E)
    w_ih = params["w_ih"]                    # (E, H)  (= PyTorch W_ih^T)
    w_hh = params["w_hh"]                    # (H, H)  (= PyTorch W_hh^T)
    b_rnn = params["b_rnn"]                  # (1, H)  (= b_ih + b_hh)
    w_fc = params["w_fc"]                    # (H, O)  (= PyTorch fc.weight^T)
    b_fc = params["b_fc"]                    # (1, O)

    B, T = text_ids.shape
    E = emb.shape[1]
    H = w_hh.shape[0]
    O = w_fc.shape[1]

    # Zero-padding for lane/sublane density (numerically exact).
    Bp = _round_up(B, 8)          # f32 sublane height
    Ep = _round_up(E, 128)        # lane-dense MXU K
    Op = _round_up(O, 128)        # lane-dense output store

    if t_chunk is None:
        t_chunk = next(c for c in range(min(T, 16), 0, -1) if T % c == 0)
    assert T % t_chunk == 0, "t_chunk must divide the sequence length"
    n_chunks = T // t_chunk

    # Embedding gather stays in JAX glue (data-dependent).  Gather with
    # transposed ids so the activation is produced time-major directly (only
    # the tiny int id matrix is transposed), pad the small table instead of
    # the big activation, and gather in bf16 to halve HBM bytes.
    emb_p = jnp.pad(emb, ((0, 0), (0, Ep - E))).astype(jnp.bfloat16)    # (V, Ep)
    ids = jnp.pad(text_ids, ((0, Bp - B), (0, 0)))                      # (Bp, T)
    x_tbe = jnp.take(emb_p, ids.T, axis=0)                              # (T, Bp, Ep)
    x_2d = x_tbe.reshape(T * Bp, Ep)                                    # row = t*Bp + b

    wih_p = jnp.pad(w_ih, ((0, Ep - E), (0, 0))).astype(jnp.bfloat16)   # (Ep, H)
    whh_b = w_hh.astype(jnp.bfloat16)                                   # (H, H)
    b_rnn_f = b_rnn.astype(jnp.float32)                                 # (1, H)
    wfc_p = jnp.pad(w_fc, ((0, 0), (0, Op - O))).astype(jnp.bfloat16)   # (H, Op)
    bfc_p = jnp.pad(b_fc, ((0, 0), (0, Op - O))).astype(jnp.float32)    # (1, Op)

    rows = t_chunk * Bp
    grid_spec = pltpu.PrefetchScalarGridSpec(
        num_scalar_prefetch=0,
        grid=(n_chunks,),
        in_specs=[
            pl.BlockSpec((rows, Ep), lambda t: (t, 0)),     # streamed x chunk
            pl.BlockSpec((Ep, H), lambda t: (0, 0)),        # resident weights
            pl.BlockSpec((H, H), lambda t: (0, 0)),
            pl.BlockSpec((1, H), lambda t: (0, 0)),
            pl.BlockSpec((H, Op), lambda t: (0, 0)),
            pl.BlockSpec((1, Op), lambda t: (0, 0)),
        ],
        out_specs=pl.BlockSpec((Bp, Op), lambda t: (0, 0)),
        scratch_shapes=[pltpu.VMEM((Bp, H), jnp.float32)],  # hidden-state carry
    )

    cost = pl.CostEstimate(
        flops=2 * T * Bp * Ep * H + 2 * T * Bp * H * H + 2 * Bp * H * Op,
        transcendentals=T * Bp * H,
        bytes_accessed=(x_2d.size * 2 + wih_p.size * 2 + whh_b.size * 2
                        + wfc_p.size * 2 + (b_rnn_f.size + bfc_p.size) * 4
                        + Bp * Op * 4),
    )

    logits_p = pl.pallas_call(
        rnn_classifier_kernel,
        out_shape=jax.ShapeDtypeStruct((Bp, Op), jnp.float32),
        grid_spec=grid_spec,
        compiler_params=pltpu.CompilerParams(
            dimension_semantics=("arbitrary",)),   # recurrence is sequential
        cost_estimate=cost,
    )(x_2d, wih_p, whh_b, b_rnn_f, wfc_p, bfc_p)

    return logits_p[:B, :O]


def rnn_reference(text_ids, params):
    """Pure-JAX f32 reference replicating the PyTorch forward pass."""
    emb = jnp.take(params["embedding"], text_ids, axis=0)        # (B, T, E)
    B = emb.shape[0]
    H = params["w_hh"].shape[0]

    def step(h, x_t):
        h = jnp.tanh(x_t @ params["w_ih"] + h @ params["w_hh"]
                     + params["b_rnn"])
        return h, None

    h0 = jnp.zeros((B, H), jnp.float32)
    h_last, _ = lax.scan(step, h0, jnp.transpose(emb, (1, 0, 2)))
    return h_last @ params["w_fc"] + params["b_fc"]


def init_params(key, vocab_size, embedding_dim, hidden_dim, output_dim):
    k_emb, k_ih, k_hh, k_bih, k_bhh, k_fw, k_fb = jax.random.split(key, 7)
    s_rnn = 1.0 / jnp.sqrt(hidden_dim)
    s_fc = 1.0 / jnp.sqrt(hidden_dim)
    params = {
        # nn.Embedding default init: N(0, 1)
        "embedding": jax.random.normal(k_emb, (vocab_size, embedding_dim),
                                       jnp.float32),
        # nn.RNN params U(-1/sqrt(H), 1/sqrt(H)); stored transposed for x @ W
        "w_ih": jax.random.uniform(k_ih, (embedding_dim, hidden_dim),
                                   jnp.float32, -s_rnn, s_rnn),
        "w_hh": jax.random.uniform(k_hh, (hidden_dim, hidden_dim),
                                   jnp.float32, -s_rnn, s_rnn),
        "b_rnn": (jax.random.uniform(k_bih, (1, hidden_dim), jnp.float32,
                                     -s_rnn, s_rnn)
                  + jax.random.uniform(k_bhh, (1, hidden_dim), jnp.float32,
                                       -s_rnn, s_rnn)),
        # nn.Linear: U(-1/sqrt(in_features), 1/sqrt(in_features))
        "w_fc": jax.random.uniform(k_fw, (hidden_dim, output_dim),
                                   jnp.float32, -s_fc, s_fc),
        "b_fc": jax.random.uniform(k_fb, (1, output_dim), jnp.float32,
                                   -s_fc, s_fc),
    }
    return params


if __name__ == "__main__":
    vocab_size = 50
    embedding_dim = 100
    hidden_dim = 256
    output_dim = 2
    batch = 2
    seq_len = 8

    key = jax.random.PRNGKey(0)
    k_params, k_text = jax.random.split(key)

    params = init_params(k_params, vocab_size, embedding_dim, hidden_dim,
                         output_dim)
    text = jax.random.randint(k_text, (batch, seq_len), 0, vocab_size,
                              dtype=jnp.int32)

    # t_chunk=4 -> grid of 2 time chunks, exercising the VMEM hidden-state
    # carry and both pl.when (init / finalize) paths.
    fwd = jax.jit(lambda ids: rnn_text_classifier(ids, params, t_chunk=4))
    logits = fwd(text)
    jax.block_until_ready(logits)
    assert logits.shape == (batch, output_dim)

    # bf16 operands / f32 accumulation: allow small numerical drift vs f32 ref.
    ref = rnn_reference(text, params)
    assert jnp.allclose(logits, ref, atol=5e-2, rtol=5e-2), (
        float(jnp.max(jnp.abs(logits - ref))))
    print("KERNEL_OK")
</pallas_src>

<mosaic_0001>
module attributes {stable_mosaic.version = 11 : i64} {
  func.func @rnn_classifier_kernel(%arg0: i32, %arg1: memref<32x128xbf16, #tpu.memory_space<vmem>>, %arg2: memref<128x256xbf16, #tpu.memory_space<vmem>>, %arg3: memref<256x256xbf16, #tpu.memory_space<vmem>>, %arg4: memref<1x256xf32, #tpu.memory_space<vmem>>, %arg5: memref<256x128xbf16, #tpu.memory_space<vmem>>, %arg6: memref<1x128xf32, #tpu.memory_space<vmem>>, %arg7: memref<8x128xf32, #tpu.memory_space<vmem>>, %arg8: memref<8x256xf32, #tpu.memory_space<vmem>>) attributes {dimension_semantics = [#tpu.dimension_semantics<arbitrary>], iteration_bounds = array<i64: 2>, scalar_prefetch = 0 : i64, scratch_operands = 1 : i64, tpu.core_type = #tpu.core_type<tc>, window_params = [{transform_indices = @transform_0, window_bounds = array<i64: 32, 128>}, {pipeline_mode = #tpu.pipeline_mode<synchronous>, transform_indices = @transform_1, window_bounds = array<i64: 128, 256>}, {pipeline_mode = #tpu.pipeline_mode<synchronous>, transform_indices = @transform_2, window_bounds = array<i64: 256, 256>}, {pipeline_mode = #tpu.pipeline_mode<synchronous>, transform_indices = @transform_3, window_bounds = array<i64: 1, 256>}, {pipeline_mode = #tpu.pipeline_mode<synchronous>, transform_indices = @transform_4, window_bounds = array<i64: 256, 128>}, {pipeline_mode = #tpu.pipeline_mode<synchronous>, transform_indices = @transform_5, window_bounds = array<i64: 1, 128>}, {pipeline_mode = #tpu.pipeline_mode<synchronous>, transform_indices = @transform_6, window_bounds = array<i64: 8, 128>}]} {
    %c0_i32 = arith.constant 0 : i32
    %0 = arith.cmpi eq, %arg0, %c0_i32 : i32
    %1 = arith.extui %0 : i1 to i32
    %c0_i32_0 = arith.constant 0 : i32
    %2 = arith.cmpi ne, %1, %c0_i32_0 : i32
    scf.if %2 {
      %cst_17 = arith.constant 0.000000e+00 : f32
      %35 = vector.broadcast %cst_17 : f32 to vector<8x256xf32>
      %c0_18 = arith.constant 0 : index
      %c0_19 = arith.constant 0 : index
      %36 = vector.load %arg8[%c0_18, %c0_19] : memref<8x256xf32, #tpu.memory_space<vmem>>, vector<8x256xf32>
      tpu.vector_store %arg8[%c0_18, %c0_19], %35 {strides = array<i32>} : memref<8x256xf32, #tpu.memory_space<vmem>>, vector<8x256xf32>,
    } else {
    }
    %c0 = arith.constant 0 : index
    %c0_1 = arith.constant 0 : index
    %3 = vector.load %arg1[%c0, %c0_1] : memref<32x128xbf16, #tpu.memory_space<vmem>>, vector<32x128xbf16>
    %c0_2 = arith.constant 0 : index
    %c0_3 = arith.constant 0 : index
    %4 = vector.load %arg2[%c0_2, %c0_3] : memref<128x256xbf16, #tpu.memory_space<vmem>>, vector<128x256xbf16>
    %cst = arith.constant dense<0.000000e+00> : vector<32x256xf32>
    %5 = tpu.matmul %3, %4, %cst {dimension_numbers = #tpu.dot_dimension_numbers<[1], [0], [0], [1], [0, 0, 1, 1], [], []>} : vector<32x128xbf16>, vector<128x256xbf16>, vector<32x256xf32> -> vector<32x256xf32>
    %c0_4 = arith.constant 0 : index
    %c0_5 = arith.constant 0 : index
    %6 = vector.load %arg4[%c0_4, %c0_5] : memref<1x256xf32, #tpu.memory_space<vmem>>, vector<1x256xf32>
    %7 = vector.broadcast %6 : vector<1x256xf32> to vector<32x256xf32>
    %8 = arith.addf %5, %7 : vector<32x256xf32>
    %c0_6 = arith.constant 0 : index
    %c0_7 = arith.constant 0 : index
    %9 = vector.load %arg3[%c0_6, %c0_7] : memref<256x256xbf16, #tpu.memory_space<vmem>>, vector<256x256xbf16>
    %c0_8 = arith.constant 0 : index
    %c0_9 = arith.constant 0 : index
    %10 = vector.load %arg8[%c0_8, %c0_9] : memref<8x256xf32, #tpu.memory_space<vmem>>, vector<8x256xf32>
    %11 = vector.extract_strided_slice %8 {offsets = [0, 0], sizes = [8, 256], strides = [1, 1]} : vector<32x256xf32> to vector<8x256xf32>
    %12 = arith.truncf %10 : vector<8x256xf32> to vector<8x256xbf16>
    %cst_10 = arith.constant dense<0.000000e+00> : vector<8x256xf32>
    %13 = tpu.matmul %12, %9, %cst_10 {dimension_numbers = #tpu.dot_dimension_numbers<[1], [0], [0], [1], [0, 0, 1, 1], [], []>} : vector<8x256xbf16>, vector<256x256xbf16>, vector<8x256xf32> -> vector<8x256xf32>
    %14 = arith.addf %11, %13 : vector<8x256xf32>
    %15 = math.tanh %14 : vector<8x256xf32>
    %16 = vector.extract_strided_slice %8 {offsets = [8, 0], sizes = [8, 256], strides = [1, 1]} : vector<32x256xf32> to vector<8x256xf32>
    %17 = arith.truncf %15 : vector<8x256xf32> to vector<8x256xbf16>
    %cst_11 = arith.constant dense<0.000000e+00> : vector<8x256xf32>
    %18 = tpu.matmul %17, %9, %cst_11 {dimension_numbers = #tpu.dot_dimension_numbers<[1], [0], [0], [1], [0, 0, 1, 1], [], []>} : vector<8x256xbf16>, vector<256x256xbf16>, vector<8x256xf32> -> vector<8x256xf32>
    %19 = arith.addf %16, %18 : vector<8x256xf32>
    %20 = math.tanh %19 : vector<8x256xf32>
    %21 = vector.extract_strided_slice %8 {offsets = [16, 0], sizes = [8, 256], strides = [1, 1]} : vector<32x256xf32> to vector<8x256xf32>
    %22 = arith.truncf %20 : vector<8x256xf32> to vector<8x256xbf16>
    %cst_12 = arith.constant dense<0.000000e+00> : vector<8x256xf32>
    %23 = tpu.matmul %22, %9, %cst_12 {dimension_numbers = #tpu.dot_dimension_numbers<[1], [0], [0], [1], [0, 0, 1, 1], [], []>} : vector<8x256xbf16>, vector<256x256xbf16>, vector<8x256xf32> -> vector<8x256xf32>
    %24 = arith.addf %21, %23 : vector<8x256xf32>
    %25 = math.tanh %24 : vector<8x256xf32>
    %26 = vector.extract_strided_slice %8 {offsets = [24, 0], sizes = [8, 256], strides = [1, 1]} : vector<32x256xf32> to vector<8x256xf32>
    %27 = arith.truncf %25 : vector<8x256xf32> to vector<8x256xbf16>
    %cst_13 = arith.constant dense<0.000000e+00> : vector<8x256xf32>
    %28 = tpu.matmul %27, %9, %cst_13 {dimension_numbers = #tpu.dot_dimension_numbers<[1], [0], [0], [1], [0, 0, 1, 1], [], []>} : vector<8x256xbf16>, vector<256x256xbf16>, vector<8x256xf32> -> vector<8x256xf32>
    %29 = arith.addf %26, %28 : vector<8x256xf32>
    %30 = math.tanh %29 : vector<8x256xf32>
    %c0_14 = arith.constant 0 : index
    %c0_15 = arith.constant 0 : index
    %31 = vector.load %arg8[%c0_14, %c0_15] : memref<8x256xf32, #tpu.memory_space<vmem>>, vector<8x256xf32>
    tpu.vector_store %arg8[%c0_14, %c0_15], %30 {strides = array<i32>} : memref<8x256xf32, #tpu.memory_space<vmem>>, vector<8x256xf32>,
    %c1_i32 = arith.constant 1 : i32
    %32 = arith.cmpi eq, %arg0, %c1_i32 : i32
    %33 = arith.extui %32 : i1 to i32
    %c0_i32_16 = arith.constant 0 : i32
    %34 = arith.cmpi ne, %33, %c0_i32_16 : i32
    scf.if %34 {
      %35 = arith.truncf %30 : vector<8x256xf32> to vector<8x256xbf16>
      %c0_17 = arith.constant 0 : index
      %c0_18 = arith.constant 0 : index
      %36 = vector.load %arg5[%c0_17, %c0_18] : memref<256x128xbf16, #tpu.memory_space<vmem>>, vector<256x128xbf16>
      %cst_19 = arith.constant dense<0.000000e+00> : vector<8x128xf32>
      %37 = tpu.matmul %35, %36, %cst_19 {dimension_numbers = #tpu.dot_dimension_numbers<[1], [0], [0], [1], [0, 0, 1, 1], [], []>} : vector<8x256xbf16>, vector<256x128xbf16>, vector<8x128xf32> -> vector<8x128xf32>
      %c0_20 = arith.constant 0 : index
      %c0_21 = arith.constant 0 : index
      %38 = vector.load %arg6[%c0_20, %c0_21] : memref<1x128xf32, #tpu.memory_space<vmem>>, vector<1x128xf32>
      %39 = vector.broadcast %38 : vector<1x128xf32> to vector<8x128xf32>
      %40 = arith.addf %37, %39 : vector<8x128xf32>
      %c0_22 = arith.constant 0 : index
      %c0_23 = arith.constant 0 : index
      %41 = vector.load %arg7[%c0_22, %c0_23] : memref<8x128xf32, #tpu.memory_space<vmem>>, vector<8x128xf32>
      tpu.vector_store %arg7[%c0_22, %c0_23], %40 {strides = array<i32>} : memref<8x128xf32, #tpu.memory_space<vmem>>, vector<8x128xf32>,
    } else {
    }
    return
  }
  func.func @transform_0(%arg0: i32) -> (i32, i32) {
    %c0_i32 = arith.constant 0 : i32
    %c0_i32_0 = arith.constant 0 : i32
    return %arg0, %c0_i32 : i32, i32
  }
  func.func @transform_1(%arg0: i32) -> (i32, i32) {
    %c0_i32 = arith.constant 0 : i32
    %c0_i32_0 = arith.constant 0 : i32
    %c0_i32_1 = arith.constant 0 : i32
    return %c0_i32, %c0_i32_0 : i32, i32
  }
  func.func @transform_2(%arg0: i32) -> (i32, i32) {
    %c0_i32 = arith.constant 0 : i32
    %c0_i32_0 = arith.constant 0 : i32
    %c0_i32_1 = arith.constant 0 : i32
    return %c0_i32, %c0_i32_0 : i32, i32
  }
  func.func @transform_3(%arg0: i32) -> (i32, i32) {
    %c0_i32 = arith.constant 0 : i32
    %c0_i32_0 = arith.constant 0 : i32
    %c0_i32_1 = arith.constant 0 : i32
    return %c0_i32, %c0_i32_0 : i32, i32
  }
  func.func @transform_4(%arg0: i32) -> (i32, i32) {
    %c0_i32 = arith.constant 0 : i32
    %c0_i32_0 = arith.constant 0 : i32
    %c0_i32_1 = arith.constant 0 : i32
    return %c0_i32, %c0_i32_0 : i32, i32
  }
  func.func @transform_5(%arg0: i32) -> (i32, i32) {
    %c0_i32 = arith.constant 0 : i32
    %c0_i32_0 = arith.constant 0 : i32
    %c0_i32_1 = arith.constant 0 : i32
    return %c0_i32, %c0_i32_0 : i32, i32
  }
  func.func @transform_6(%arg0: i32) -> (i32, i32) {
    %c0_i32 = arith.constant 0 : i32
    %c0_i32_0 = arith.constant 0 : i32
    %c0_i32_1 = arith.constant 0 : i32
    return %c0_i32, %c0_i32_0 : i32, i32
  }
}

</mosaic_0001>

<llo_original>
// kernel: _lambda_.1
$region0: #{_lambda_.1}
  #allocation0 [shape = 'u32[]', space=smem, size = 0x4, offset = 0x4, fixed_abs, tag = 'smem constant byte address 0x4 - core index']
  #allocation1 [shape = 'u32[144,128]{1,0:T(1,128)}', space=vmem, size = 0x12000, scoped, tag = 'internal scratch']
  #allocation2 [shape = 'f32[8,256]{1,0:T(8,128)}', space=vmem, size = 0x2000, scoped, tag = 'scratch operand']
  %s0 = inlined_call_operand.vmem [shape: bf16[64,128], index: 0, kind: input, shape index: {}]
  %s1 = inlined_call_operand.vmem [shape: bf16[128,256], index: 1, kind: input, shape index: {}]
  %s2 = inlined_call_operand.vmem [shape: bf16[256,256], index: 2, kind: input, shape index: {}]
  %s3 = inlined_call_operand.vmem [shape: f32[1,256], index: 3, kind: input, shape index: {}]
  %s4 = inlined_call_operand.vmem [shape: bf16[256,128], index: 4, kind: input, shape index: {}]
  %s5 = inlined_call_operand.vmem [shape: f32[1,128], index: 5, kind: input, shape index: {}]
  %s6 = inlined_call_operand.vmem [shape: f32[8,128], index: 6, kind: output, shape index: {}]
  %s7 = sld [smem:[#allocation0]]
  $region65: #{_lambda_.1} parent=0
    _
  %s9 = ssub.s32 1, %s7
  %s10 = scalar_select 0, %s9, %s7
  loop: start=0, step=1, limit=4
  $region2: #{_lambda_.1} parent=0 // loop_pre_header
    _
  $region3: #{_lambda_.1} parent=0 // loop_header
    %s12 = sphi 0, %s16
    %p13 = scmp.ge.s32.totalorder %s12, 4
    %s22 = sphi 0, %s24
    %s25 = sphi 0, %s22
    %s26 = sphi 0, %s25
    %s42 = sphi 0, %s26
    %s46 = sphi 0, %s46
    %s48 = sphi 0, %s46
    %s49 = sphi 0, %s48
    %s63 = sphi 0, %s49
    %s67 = sphi 0, %s67
    %s69 = sphi 0, %s67
    %s70 = sphi 0, %s69
    %s84 = sphi 0, %s70
    %s88 = sphi 0, %s88
    %s90 = sphi 0, %s88
    %s91 = sphi 0, %s90
    %s105 = sphi 0, %s91
    %s109 = sphi 0, %s109
    %s111 = sphi 0, %s109
    %s112 = sphi 0, %s111
    %s126 = sphi 0, %s112
    %s130 = sphi 0, %s130
    %s132 = sphi 0, %s130
    %s133 = sphi 0, %s132
    %s147 = sphi 0, %s133
    %s151 = sphi 0, %s151
    %s153 = sphi 0, %s151
    %s154 = sphi 0, %s153
    %s168 = sphi 0, %s154
  $region4: #{_lambda_.1} parent=0 // loop_header_branch
    %15 = sbr.rel (%p13) target = $region8
  $region5: #{_lambda_.1} parent=0 // loop_body
    %s17 = ssub.s32 %s12, 1
    %s18 = ssub.s32 %s12, 2
    %s19 = sadd.s32 %s12, 1
    %s20 = ssub.s32 %s12, %s19
    %p21 = scmp.eq.s32.totalorder %s20, 0
    %s23 = sadd.s32 %s22, 1
    %s24 = scalar_select %p21, %s22, %s23
    %p27 = pneg %p21
    %p28 = scmp.eq.s32.totalorder %s12, 1
    %p29 = por %p27, %p28
    %p30 = scmp.ne.s32.totalorder %s22, %s25
    %p31 = scmp.eq.s32.totalorder %s12, 0
    %p32 = por %p30, %p31
    %p33 = scmp.ne.s32.totalorder %s22, %s25
    %p34 = scmp.eq.s32.totalorder %s17, 1
    %p35 = por %p33, %p34
    %p36 = scmp.ne.s32.totalorder %s25, %s26
    %p37 = scmp.eq.s32.totalorder %s17, 0
    %p38 = por %p36, %p37
    %p39 = scmp.ne.s32.totalorder %s25, %s26
    %p40 = scmp.eq.s32.totalorder %s18, 1
    %p41 = por %p39, %p40
    %p43 = scmp.ne.s32.totalorder %s26, %s42
    %p44 = scmp.eq.s32.totalorder %s18, 0
    %p45 = por %p43, %p44
    %s47 = sadd.s32 %s46, 1
    %p50 = scmp.eq.s32.totalorder %s12, 1
    %p51 = scmp.ne.s32.totalorder %s46, %s48
    %p52 = scmp.eq.s32.totalorder %s12, 0
    %p53 = por %p51, %p52
    %p54 = scmp.ne.s32.totalorder %s46, %s48
    %p55 = scmp.eq.s32.totalorder %s17, 1
    %p56 = por %p54, %p55
    %p57 = scmp.ne.s32.totalorder %s48, %s49
    %p58 = scmp.eq.s32.totalorder %s17, 0
    %p59 = por %p57, %p58
    %p60 = scmp.ne.s32.totalorder %s48, %s49
    %p61 = scmp.eq.s32.totalorder %s18, 1
    %p62 = por %p60, %p61
    %p64 = scmp.ne.s32.totalorder %s49, %s63
    %p65 = scmp.eq.s32.totalorder %s18, 0
    %p66 = por %p64, %p65
    %s68 = sadd.s32 %s67, 1
    %p71 = scmp.eq.s32.totalorder %s12, 1
    %p72 = scmp.ne.s32.totalorder %s67, %s69
    %p73 = scmp.eq.s32.totalorder %s12, 0
    %p74 = por %p72, %p73
    %p75 = scmp.ne.s32.totalorder %s67, %s69
    %p76 = scmp.eq.s32.totalorder %s17, 1
    %p77 = por %p75, %p76
    %p78 = scmp.ne.s32.totalorder %s69, %s70
    %p79 = scmp.eq.s32.totalorder %s17, 0
    %p80 = por %p78, %p79
    %p81 = scmp.ne.s32.totalorder %s69, %s70
    %p82 = scmp.eq.s32.totalorder %s18, 1
    %p83 = por %p81, %p82
    %p85 = scmp.ne.s32.totalorder %s70, %s84
    %p86 = scmp.eq.s32.totalorder %s18, 0
    %p87 = por %p85, %p86
    %s89 = sadd.s32 %s88, 1
    %p92 = scmp.eq.s32.totalorder %s12, 1
    %p93 = scmp.ne.s32.totalorder %s88, %s90
    %p94 = scmp.eq.s32.totalorder %s12, 0
    %p95 = por %p93, %p94
    %p96 = scmp.ne.s32.totalorder %s88, %s90
    %p97 = scmp.eq.s32.totalorder %s17, 1
    %p98 = por %p96, %p97
    %p99 = scmp.ne.s32.totalorder %s90, %s91
    %p100 = scmp.eq.s32.totalorder %s17, 0
    %p101 = por %p99, %p100
    %p102 = scmp.ne.s32.totalorder %s90, %s91
    %p103 = scmp.eq.s32.totalorder %s18, 1
    %p104 = por %p102, %p103
    %p106 = scmp.ne.s32.totalorder %s91, %s105
    %p107 = scmp.eq.s32.totalorder %s18, 0
    %p108 = por %p106, %p107
    %s110 = sadd.s32 %s109, 1
    %p113 = scmp.eq.s32.totalorder %s12, 1
    %p114 = scmp.ne.s32.totalorder %s109, %s111
    %p115 = scmp.eq.s32.totalorder %s12, 0
    %p116 = por %p114, %p115
    %p117 = scmp.ne.s32.totalorder %s109, %s111
    %p118 = scmp.eq.s32.totalorder %s17, 1
    %p119 = por %p117, %p118
    %p120 = scmp.ne.s32.totalorder %s111, %s112
    %p121 = scmp.eq.s32.totalorder %s17, 0
    %p122 = por %p120, %p121
    %p123 = scmp.ne.s32.totalorder %s111, %s112
    %p124 = scmp.eq.s32.totalorder %s18, 1
    %p125 = por %p123, %p124
    %p127 = scmp.ne.s32.totalorder %s112, %s126
    %p128 = scmp.eq.s32.totalorder %s18, 0
    %p129 = por %p127, %p128
    %s131 = sadd.s32 %s130, 1
    %p134 = scmp.eq.s32.totalorder %s12, 1
    %p135 = scmp.ne.s32.totalorder %s130, %s132
    %p136 = scmp.eq.s32.totalorder %s12, 0
    %p137 = por %p135, %p136
    %p138 = scmp.ne.s32.totalorder %s130, %s132
    %p139 = scmp.eq.s32.totalorder %s17, 1
    %p140 = por %p138, %p139
    %p141 = scmp.ne.s32.totalorder %s132, %s133
    %p142 = scmp.eq.s32.totalorder %s17, 0
    %p143 = por %p141, %p142
    %p144 = scmp.ne.s32.totalorder %s132, %s133
    %p145 = scmp.eq.s32.totalorder %s18, 1
    %p146 = por %p144, %p145
    %p148 = scmp.ne.s32.totalorder %s133, %s147
    %p149 = scmp.eq.s32.totalorder %s18, 0
    %p150 = por %p148, %p149
    %s152 = sadd.s32 %s151, 1
    %p155 = scmp.eq.s32.totalorder %s12, 1
    %p156 = scmp.ne.s32.totalorder %s151, %s153
    %p157 = scmp.eq.s32.totalorder %s12, 0
    %p158 = por %p156, %p157
    %p159 = scmp.ne.s32.totalorder %s151, %s153
    %p160 = scmp.eq.s32.totalorder %s17, 1
    %p161 = por %p159, %p160
    %p162 = scmp.ne.s32.totalorder %s153, %s154
    %p163 = scmp.eq.s32.totalorder %s17, 0
    %p164 = por %p162, %p163
    %p165 = scmp.ne.s32.totalorder %s153, %s154
    %p166 = scmp.eq.s32.totalorder %s18, 1
    %p167 = por %p165, %p166
    %p169 = scmp.ne.s32.totalorder %s154, %s168
    %p170 = scmp.eq.s32.totalorder %s18, 0
    %p171 = por %p169, %p170
    %p172 = scmp.le.s32.totalorder 1, %s12
    %p173 = scmp.lt.s32.totalorder %s12, 3
    %p174 = pnand %p172, %p173
    %p175 = pneg %p174
    // Predicated region
    $region9: #{_lambda_.1} parent=5 // pred_check
      _
    $region10: #{_lambda_.1} parent=5 // pred_check_branch
      %177 = sbr.rel (%p174) target = $region12
    $region11: #{_lambda_.1} parent=5 // pred_region
      %s178 = ssub.s32 %s12, 1
      // Predicated region
      $region13: #{_lambda_.1} parent=11 // pred_check
        %p179 = pneg %p59
      $region14: #{_lambda_.1} parent=11 // pred_check_branch
        %181 = sbr.rel (%p179) target = $region16
      $region15: #{_lambda_.1} parent=11 // pred_region
        _
      $region16: #{_lambda_.1} parent=11 // pred_fallthru
        _
      // Predicated region
      $region17: #{_lambda_.1} parent=11 // pred_check
        %p182 = pneg %p80
      $region18: #{_lambda_.1} parent=11 // pred_check_branch
        %184 = sbr.rel (%p182) target = $region20
      $region19: #{_lambda_.1} parent=11 // pred_region
        _
      $region20: #{_lambda_.1} parent=11 // pred_fallthru
        _
      // Predicated region
      $region21: #{_lambda_.1} parent=11 // pred_check
        %p185 = pneg %p101
      $region22: #{_lambda_.1} parent=11 // pred_check_branch
        %187 = sbr.rel (%p185) target = $region24
      $region23: #{_lambda_.1} parent=11 // pred_region
        _
      $region24: #{_lambda_.1} parent=11 // pred_fallthru
        _
      // Predicated region
      $region25: #{_lambda_.1} parent=11 // pred_check
        %p188 = pneg %p122
      $region26: #{_lambda_.1} parent=11 // pred_check_branch
        %190 = sbr.rel (%p188) target = $region28
      $region27: #{_lambda_.1} parent=11 // pred_region
        _
      $region28: #{_lambda_.1} parent=11 // pred_fallthru
        _
      // Predicated region
      $region29: #{_lambda_.1} parent=11 // pred_check
        %p191 = pneg %p143
      $region30: #{_lambda_.1} parent=11 // pred_check_branch
        %193 = sbr.rel (%p191) target = $region32
      $region31: #{_lambda_.1} parent=11 // pred_region
        _
      $region32: #{_lambda_.1} parent=11 // pred_fallthru
        _
    $region12: #{_lambda_.1} parent=5 // pred_fallthru
      _
    %p194 = scmp.lt.s32.totalorder %s12, 2
    // Predicated region
    $region33: #{_lambda_.1} parent=5 // pred_check
      %p195 = pneg %p194
    $region34: #{_lambda_.1} parent=5 // pred_check_branch
      %197 = sbr.rel (%p195) target = $region36
    $region35: #{_lambda_.1} parent=5 // pred_region
      // Predicated region
      $region37: #{_lambda_.1} parent=35 // pred_check
        %p198 = pneg %p32
      $region38: #{_lambda_.1} parent=35 // pred_check_branch
        %200 = sbr.rel (%p198) target = $region40
      $region39: #{_lambda_.1} parent=35 // pred_region
        %s201 = smul.u32 4, %s12
        %p202 = scmp.lt.s32.totalorder %s201, 7
        %s203 = scalar_select %p202, %s201, 7
        %s204 = smul.addr %s203, 4
        %s205 = scalar_lea.vmem %s0, %s204
        %s206 = smul.u32 4, %s12
      $region40: #{_lambda_.1} parent=35 // pred_fallthru
        _
    $region36: #{_lambda_.1} parent=5 // pred_fallthru
      _
    %p207 = scmp.le.s32.totalorder 1, %s12
    %p208 = scmp.lt.s32.totalorder %s12, 3
    %p209 = pnand %p207, %p208
    %p210 = pneg %p209
    // Predicated region
    $region41: #{_lambda_.1} parent=5 // pred_check
      _
    $region42: #{_lambda_.1} parent=5 // pred_check_branch
      %212 = sbr.rel (%p209) target = $region44
    $region43: #{_lambda_.1} parent=5 // pred_region
      %s213 = ssub.s32 %s12, 1
      %s214 = smul.u32 4, %s17
      %p215 = scmp.lt.s32.totalorder %s214, 7
      %s216 = scalar_select %p215, %s214, 7
      %s217 = smul.addr %s216, 4
      %s218 = scalar_lea.vmem %s0, %s217
      %p219 = pneg %p38
      %p220 = pneg %p35
      %p221 = pneg %p59
      %p222 = pneg %p56
      %p223 = pneg %p80
      %p224 = pneg %p77
      %p225 = pneg %p101
      %p226 = pneg %p98
      %p227 = pneg %p122
      %p228 = pneg %p119
      %p229 = pneg %p143
      %p230 = pneg %p140
      %p231 = pneg %p164
      %p232 = pneg %p161
      %s233 = smul.u32 4, %s17
      %p234 = scmp.lt.s32.totalorder %s233, 7
      %s235 = scalar_select %p234, %s233, 7
      %s236 = smul.addr %s235, 4
      %s237 = scalar_lea.vmem %s0, %s236
      %s238 = smul.u32 4, %s17
      %p240 = scmp.eq.s32.totalorder %s17, 0
      // Predicated region
      $region45: #{_lambda_.1} parent=43 // pred_check
        %p241 = pneg %p240
      $region46: #{_lambda_.1} parent=43 // pred_check_branch
        %243 = sbr.rel (%p241) target = $region48
      $region47: #{_lambda_.1} parent=43 // pred_region
        %244 = vst [vmem:[#allocation2] sm:$0xff] 0.0
        %245 = vst [vmem:[#allocation2 + $0x8] sm:$0xff] 0.0
      $region48: #{_lambda_.1} parent=43 // pred_fallthru
        _
      %v246 = vld [vmem:[%s237] sm:$0xf]
      %v247 = vld [vmem:[%s237 + $0x4] sm:$0xf]
      %v248 = vld [vmem:[%s237 + $0x8] sm:$0xf]
      %v249 = vld [vmem:[%s237 + $0xc] sm:$0xf]
      %v250 = vld [vmem:[%s1] sm:$0xff]
      %v251 = vld [vmem:[%s1 + $0x8] sm:$0xff]
      %v252 = vld [vmem:[%s1 + $0x10] sm:$0xff]
      %v253 = vld [vmem:[%s1 + $0x18] sm:$0xff]
      %v254 = vld [vmem:[%s1 + $0x20] sm:$0xff]
      %v255 = vld [vmem:[%s1 + $0x28] sm:$0xff]
      %v256 = vld [vmem:[%s1 + $0x30] sm:$0xff]
      %v257 = vld [vmem:[%s1 + $0x38] sm:$0xff]
      %v258 = vld [vmem:[%s1 + $0x40] sm:$0xff]
      %v259 = vld [vmem:[%s1 + $0x48] sm:$0xff]
      %v260 = vld [vmem:[%s1 + $0x50] sm:$0xff]
      %v261 = vld [vmem:[%s1 + $0x58] sm:$0xff]
      %v262 = vld [vmem:[%s1 + $0x60] sm:$0xff]
      %v263 = vld [vmem:[%s1 + $0x68] sm:$0xff]
      %v264 = vld [vmem:[%s1 + $0x70] sm:$0xff]
      %v265 = vld [vmem:[%s1 + $0x78] sm:$0xff]
      %v266 = vld [vmem:[%s3] sm:$0x3]
      %v268 = vlaneseq
      %v269 = vshrl.u32 %v268, 7
      %v270 = vsub.s32 0, %v269
      %v271 = vrot.slane %v266, %v270
      %v272 = vlaneseq
      %v273 = vshrl.u32 %v272, 7
      %v274 = vsub.s32 1, %v273
      %v275 = vrot.slane %v266, %v274
      %v282 = vunpack.c.l.b16 %v246
      %v283 = vunpack.c.l.b16 %v247
      %v284 = vunpack.c.l.b16 %v248
      %v285 = vunpack.c.l.b16 %v249
      %v286 = vpack.c.b16 %v283, %v282
      %v287 = vpack.c.b16 %v285, %v284
      %v306 = vunpack.c.l.b16 %v250
      %v307 = vunpack.c.h.b16 %v250
      %v308 = vunpack.c.l.b16 %v251
      %v309 = vunpack.c.h.b16 %v251
      %v310 = vunpack.c.l.b16 %v252
      %v311 = vunpack.c.h.b16 %v252
      %v312 = vunpack.c.l.b16 %v253
      %v313 = vunpack.c.h.b16 %v253
      %v314 = vunpack.c.l.b16 %v254
      %v315 = vunpack.c.h.b16 %v254
      %v316 = vunpack.c.l.b16 %v255
      %v317 = vunpack.c.h.b16 %v255
      %v318 = vunpack.c.l.b16 %v256
      %v319 = vunpack.c.h.b16 %v256
      %v320 = vunpack.c.l.b16 %v257
      %v321 = vunpack.c.h.b16 %v257
      %v322 = vunpack.c.l.b16 %v258
      %v323 = vunpack.c.h.b16 %v258
      %v324 = vunpack.c.l.b16 %v259
      %v325 = vunpack.c.h.b16 %v259
      %v326 = vunpack.c.l.b16 %v260
      %v327 = vunpack.c.h.b16 %v260
      %v328 = vunpack.c.l.b16 %v261
      %v329 = vunpack.c.h.b16 %v261
      %v330 = vunpack.c.l.b16 %v262
      %v331 = vunpack.c.h.b16 %v262
      %v332 = vunpack.c.l.b16 %v263
      %v333 = vunpack.c.h.b16 %v263
      %v334 = vunpack.c.l.b16 %v264
      %v335 = vunpack.c.h.b16 %v264
      %v336 = vunpack.c.l.b16 %v265
      %v337 = vunpack.c.h.b16 %v265
      %v338 = vpack.c.b16 %v308, %v306
      %v339 = vpack.c.b16 %v309, %v307
      %v340 = vpack.c.b16 %v312, %v310
      %v341 = vpack.c.b16 %v313, %v311
      %v342 = vpack.c.b16 %v316, %v314
      %v343 = vpack.c.b16 %v317, %v315
      %v344 = vpack.c.b16 %v320, %v318
      %v345 = vpack.c.b16 %v321, %v319
      %v346 = vpack.c.b16 %v324, %v322
      %v347 = vpack.c.b16 %v325, %v323
      %v348 = vpack.c.b16 %v328, %v326
      %v349 = vpack.c.b16 %v329, %v327
      %v350 = vpack.c.b16 %v332, %v330
      %v351 = vpack.c.b16 %v333, %v331
      %v352 = vpack.c.b16 %v336, %v334
      %v353 = vpack.c.b16 %v337, %v335
      %370 = vmatprep.subr.bf16.mxu0 %v339
      %371 = vmatpush1.bf16.msra.mxu0 %v338
      %372 = vmatprep.subr.bf16.mxu0 %v341
      %373 = vmatpush1.bf16.msra.mxu0 %v340
      %374 = vmatprep.subr.bf16.mxu0 %v343
      %375 = vmatpush1.bf16.msra.mxu0 %v342
      %376 = vmatprep.subr.bf16.mxu0 %v345
      %377 = vmatpush1.bf16.msra.mxu0 %v344
      %378 = vmatprep.subr.bf16.mxu0 %v347
      %379 = vmatpush1.bf16.msra.mxu0 %v346
      %380 = vmatprep.subr.bf16.mxu0 %v349
      %381 = vmatpush1.bf16.msra.mxu0 %v348
      %382 = vmatprep.subr.bf16.mxu0 %v351
      %383 = vmatpush1.bf16.msra.mxu0 %v350
      %384 = vmatprep.subr.bf16.mxu0 %v353
      %385 = vmatpush1.bf16.msra.mxu0 %v352
      %386 = vmatprep.subr.bf16.mxu0 0
      %387 = vmatpush1.bf16.msra.mxu0 0
      %388 = vmatprep.subr.bf16.mxu0 0
      %389 = vmatpush1.bf16.msra.mxu0 0
      %390 = vmatprep.subr.bf16.mxu0 0
      %391 = vmatpush1.bf16.msra.mxu0 0
      %392 = vmatprep.subr.bf16.mxu0 0
      %393 = vmatpush1.bf16.msra.mxu0 0
      %394 = vmatprep.subr.bf16.mxu0 0
      %395 = vmatpush1.bf16.msra.mxu0 0
      %396 = vmatprep.subr.bf16.mxu0 0
      %397 = vmatpush1.bf16.msra.mxu0 0
      %398 = vmatprep.subr.bf16.mxu0 0
      %399 = vmatpush1.bf16.msra.mxu0 0
      %400 = vmatprep.subr.bf16.mxu0 0
      %401 = vmatpush1.bf16.msra.mxu0 0
      %402 = vmatprep.mubr.bf16.mxu0 0
      %403 = vmatmul.mubr.bf16.gmra.mrb[0].mxu0 %v286
      %v404 = vpop.f32.mrb[0].mxu0
      %v405 = vadd.f32 %v271, %v404
      %v406 = vpop.f32.mrb[0].mxu0
      %v407 = vadd.f32 %v275, %v406
      %v408 = vpop.f32.mrb[0].mxu0
      %v409 = vadd.f32 %v271, %v408
      %v410 = vpop.f32.mrb[0].mxu0
      %v411 = vadd.f32 %v275, %v410
      %412 = vmatprep.mubr.bf16.mxu0 0
      %413 = vmatmul.mubr.bf16.gmra.mrb[0].mxu0 %v287
      %v414 = vpop.f32.mrb[0].mxu0
      %v415 = vadd.f32 %v271, %v414
      %v416 = vpop.f32.mrb[0].mxu0
      %v417 = vadd.f32 %v275, %v416
      %v418 = vpop.f32.mrb[0].mxu0
      %v419 = vadd.f32 %v271, %v418
      %v420 = vpop.f32.mrb[0].mxu0
      %v421 = vadd.f32 %v275, %v420
      %422 = vdwg.mxu0
      %v423 = vld [vmem:[%s2] sm:$0xff]
      %v424 = vld [vmem:[%s2 + $0x8] sm:$0xff]
      %v425 = vld [vmem:[%s2 + $0x10] sm:$0xff]
      %v426 = vld [vmem:[%s2 + $0x18] sm:$0xff]
      %v427 = vld [vmem:[%s2 + $0x20] sm:$0xff]
      %v428 = vld [vmem:[%s2 + $0x28] sm:$0xff]
      %v429 = vld [vmem:[%s2 + $0x30] sm:$0xff]
      %v430 = vld [vmem:[%s2 + $0x38] sm:$0xff]
      %v431 = vld [vmem:[%s2 + $0x40] sm:$0xff]
      %v432 = vld [vmem:[%s2 + $0x48] sm:$0xff]
      %v433 = vld [vmem:[%s2 + $0x50] sm:$0xff]
      %v434 = vld [vmem:[%s2 + $0x58] sm:$0xff]
      %v435 = vld [vmem:[%s2 + $0x60] sm:$0xff]
      %v436 = vld [vmem:[%s2 + $0x68] sm:$0xff]
      %v437 = vld [vmem:[%s2 + $0x70] sm:$0xff]
      %v438 = vld [vmem:[%s2 + $0x78] sm:$0xff]
      %v439 = vld [vmem:[%s2 + $0x80] sm:$0xff]
      %v440 = vld [vmem:[%s2 + $0x88] sm:$0xff]
      %v441 = vld [vmem:[%s2 + $0x90] sm:$0xff]
      %v442 = vld [vmem:[%s2 + $0x98] sm:$0xff]
      %v443 = vld [vmem:[%s2 + $0xa0] sm:$0xff]
      %v444 = vld [vmem:[%s2 + $0xa8] sm:$0xff]
      %v445 = vld [vmem:[%s2 + $0xb0] sm:$0xff]
      %v446 = vld [vmem:[%s2 + $0xb8] sm:$0xff]
      %v447 = vld [vmem:[%s2 + $0xc0] sm:$0xff]
      %v448 = vld [vmem:[%s2 + $0xc8] sm:$0xff]
      %v449 = vld [vmem:[%s2 + $0xd0] sm:$0xff]
      %v450 = vld [vmem:[%s2 + $0xd8] sm:$0xff]
      %v451 = vld [vmem:[%s2 + $0xe0] sm:$0xff]
      %v452 = vld [vmem:[%s2 + $0xe8] sm:$0xff]
      %v453 = vld [vmem:[%s2 + $0xf0] sm:$0xff]
      %v454 = vld [vmem:[%s2 + $0xf8] sm:$0xff]
      %v455 = vld [vmem:[#allocation2] sm:$0xff]
      %v456 = vld [vmem:[#allocation2 + $0x8] sm:$0xff]
      %v457 = vpack.c.bf16 %v455, %v455
      %v458 = vpack.c.bf16 %v456, %v456
      %v491 = vunpack.c.l.b16 %v423
      %v492 = vunpack.c.h.b16 %v423
      %v493 = vunpack.c.l.b16 %v424
      %v494 = vunpack.c.h.b16 %v424
      %v495 = vunpack.c.l.b16 %v425
      %v496 = vunpack.c.h.b16 %v425
      %v497 = vunpack.c.l.b16 %v426
      %v498 = vunpack.c.h.b16 %v426
      %v499 = vunpack.c.l.b16 %v427
      %v500 = vunpack.c.h.b16 %v427
      %v501 = vunpack.c.l.b16 %v428
      %v502 = vunpack.c.h.b16 %v428
      %v503 = vunpack.c.l.b16 %v429
      %v504 = vunpack.c.h.b16 %v429
      %v505 = vunpack.c.l.b16 %v430
      %v506 = vunpack.c.h.b16 %v430
      %v507 = vunpack.c.l.b16 %v431
      %v508 = vunpack.c.h.b16 %v431
      %v509 = vunpack.c.l.b16 %v432
      %v510 = vunpack.c.h.b16 %v432
      %v511 = vunpack.c.l.b16 %v433
      %v512 = vunpack.c.h.b16 %v433
      %v513 = vunpack.c.l.b16 %v434
      %v514 = vunpack.c.h.b16 %v434
      %v515 = vunpack.c.l.b16 %v435
      %v516 = vunpack.c.h.b16 %v435
      %v517 = vunpack.c.l.b16 %v436
      %v518 = vunpack.c.h.b16 %v436
      %v519 = vunpack.c.l.b16 %v437
      %v520 = vunpack.c.h.b16 %v437
      %v521 = vunpack.c.l.b16 %v438
      %v522 = vunpack.c.h.b16 %v438
      %v523 = vunpack.c.l.b16 %v439
      %v524 = vunpack.c.h.b16 %v439
      %v525 = vunpack.c.l.b16 %v440
      %v526 = vunpack.c.h.b16 %v440
      %v527 = vunpack.c.l.b16 %v441
      %v528 = vunpack.c.h.b16 %v441
      %v529 = vunpack.c.l.b16 %v442
      %v530 = vunpack.c.h.b16 %v442
      %v531 = vunpack.c.l.b16 %v443
      %v532 = vunpack.c.h.b16 %v443
      %v533 = vunpack.c.l.b16 %v444
      %v534 = vunpack.c.h.b16 %v444
      %v535 = vunpack.c.l.b16 %v445
      %v536 = vunpack.c.h.b16 %v445
      %v537 = vunpack.c.l.b16 %v446
      %v538 = vunpack.c.h.b16 %v446
      %v539 = vunpack.c.l.b16 %v447
      %v540 = vunpack.c.h.b16 %v447
      %v541 = vunpack.c.l.b16 %v448
      %v542 = vunpack.c.h.b16 %v448
      %v543 = vunpack.c.l.b16 %v449
      %v544 = vunpack.c.h.b16 %v449
      %v545 = vunpack.c.l.b16 %v450
      %v546 = vunpack.c.h.b16 %v450
      %v547 = vunpack.c.l.b16 %v451
      %v548 = vunpack.c.h.b16 %v451
      %v549 = vunpack.c.l.b16 %v452
      %v550 = vunpack.c.h.b16 %v452
      %v551 = vunpack.c.l.b16 %v453
      %v552 = vunpack.c.h.b16 %v453
      %v553 = vunpack.c.l.b16 %v454
      %v554 = vunpack.c.h.b16 %v454
      %v555 = vpack.c.b16 %v493, %v491
      %v556 = vpack.c.b16 %v494, %v492
      %v557 = vpack.c.b16 %v497, %v495
      %v558 = vpack.c.b16 %v498, %v496
      %v559 = vpack.c.b16 %v501, %v499
      %v560 = vpack.c.b16 %v502, %v500
      %v561 = vpack.c.b16 %v505, %v503
      %v562 = vpack.c.b16 %v506, %v504
      %v563 = vpack.c.b16 %v509, %v507
      %v564 = vpack.c.b16 %v510, %v508
      %v565 = vpack.c.b16 %v513, %v511
      %v566 = vpack.c.b16 %v514, %v512
      %v567 = vpack.c.b16 %v517, %v515
      %v568 = vpack.c.b16 %v518, %v516
      %v569 = vpack.c.b16 %v521, %v519
      %v570 = vpack.c.b16 %v522, %v520
      %v571 = vpack.c.b16 %v525, %v523
      %v572 = vpack.c.b16 %v526, %v524
      %v573 = vpack.c.b16 %v529, %v527
      %v574 = vpack.c.b16 %v530, %v528
      %v575 = vpack.c.b16 %v533, %v531
      %v576 = vpack.c.b16 %v534, %v532
      %v577 = vpack.c.b16 %v537, %v535
      %v578 = vpack.c.b16 %v538, %v536
      %v579 = vpack.c.b16 %v541, %v539
      %v580 = vpack.c.b16 %v542, %v540
      %v581 = vpack.c.b16 %v545, %v543
      %v582 = vpack.c.b16 %v546, %v544
      %v583 = vpack.c.b16 %v549, %v547
      %v584 = vpack.c.b16 %v550, %v548
      %v585 = vpack.c.b16 %v553, %v551
      %v586 = vpack.c.b16 %v554, %v552
      %619 = vmatprep.subr.bf16.mxu0 %v556
      %620 = vmatpush1.bf16.msra.mxu0 %v555
      %621 = vmatprep.subr.bf16.mxu0 %v558
      %622 = vmatpush1.bf16.msra.mxu0 %v557
      %623 = vmatprep.subr.bf16.mxu0 %v560
      %624 = vmatpush1.bf16.msra.mxu0 %v559
      %625 = vmatprep.subr.bf16.mxu0 %v562
      %626 = vmatpush1.bf16.msra.mxu0 %v561
      %627 = vmatprep.subr.bf16.mxu0 %v564
      %628 = vmatpush1.bf16.msra.mxu0 %v563
      %629 = vmatprep.subr.bf16.mxu0 %v566
      %630 = vmatpush1.bf16.msra.mxu0 %v565
      %631 = vmatprep.subr.bf16.mxu0 %v568
      %632 = vmatpush1.bf16.msra.mxu0 %v567
      %633 = vmatprep.subr.bf16.mxu0 %v570
      %634 = vmatpush1.bf16.msra.mxu0 %v569
      %635 = vmatprep.subr.bf16.mxu0 %v572
      %636 = vmatpush1.bf16.msra.mxu0 %v571
      %637 = vmatprep.subr.bf16.mxu0 %v574
      %638 = vmatpush1.bf16.msra.mxu0 %v573
      %639 = vmatprep.subr.bf16.mxu0 %v576
      %640 = vmatpush1.bf16.msra.mxu0 %v575
      %641 = vmatprep.subr.bf16.mxu0 %v578
      %642 = vmatpush1.bf16.msra.mxu0 %v577
      %643 = vmatprep.subr.bf16.mxu0 %v580
      %644 = vmatpush1.bf16.msra.mxu0 %v579
      %645 = vmatprep.subr.bf16.mxu0 %v582
      %646 = vmatpush1.bf16.msra.mxu0 %v581
      %647 = vmatprep.subr.bf16.mxu0 %v584
      %648 = vmatpush1.bf16.msra.mxu0 %v583
      %649 = vmatprep.subr.bf16.mxu0 %v586
      %650 = vmatpush1.bf16.msra.mxu0 %v585
      %651 = vmatprep.mubr.bf16.mxu0 %v458
      %652 = vmatmul.mubr.bf16.gmra.mrb[0].mxu0 %v457
      %v653 = vpop.f32.mrb[0].mxu0
      %v654 = vadd.f32 0.0, %v653
      %v655 = vpop.f32.mrb[0].mxu0
      %v656 = vadd.f32 0.0, %v655
      %v657 = vpop.f32.mrb[0].mxu0
      %v658 = vpop.f32.mrb[0].mxu0
      %659 = vdwg.mxu0
      %v660 = vadd.f32 %v405, %v654
      %v661 = vadd.f32 %v407, %v656
      %v662 = vtanh.pop %v660
      %v663 = vtanh.pop %v661
      %v664 = vpack.c.bf16 %v662, %v662
      %v665 = vpack.c.bf16 %v663, %v663
      %666 = vmatprep.subr.bf16.mxu0 %v556
      %667 = vmatpush1.bf16.msra.mxu0 %v555
      %668 = vmatprep.subr.bf16.mxu0 %v558
      %669 = vmatpush1.bf16.msra.mxu0 %v557
      %670 = vmatprep.subr.bf16.mxu0 %v560
      %671 = vmatpush1.bf16.msra.mxu0 %v559
      %672 = vmatprep.subr.bf16.mxu0 %v562
      %673 = vmatpush1.bf16.msra.mxu0 %v561
      %674 = vmatprep.subr.bf16.mxu0 %v564
      %675 = vmatpush1.bf16.msra.mxu0 %v563
      %676 = vmatprep.subr.bf16.mxu0 %v566
      %677 = vmatpush1.bf16.msra.mxu0 %v565
      %678 = vmatprep.subr.bf16.mxu0 %v568
      %679 = vmatpush1.bf16.msra.mxu0 %v567
      %680 = vmatprep.subr.bf16.mxu0 %v570
      %681 = vmatpush1.bf16.msra.mxu0 %v569
      %682 = vmatprep.subr.bf16.mxu0 %v572
      %683 = vmatpush1.bf16.msra.mxu0 %v571
      %684 = vmatprep.subr.bf16.mxu0 %v574
      %685 = vmatpush1.bf16.msra.mxu0 %v573
      %686 = vmatprep.subr.bf16.mxu0 %v576
      %687 = vmatpush1.bf16.msra.mxu0 %v575
      %688 = vmatprep.subr.bf16.mxu0 %v578
      %689 = vmatpush1.bf16.msra.mxu0 %v577
      %690 = vmatprep.subr.bf16.mxu0 %v580
      %691 = vmatpush1.bf16.msra.mxu0 %v579
      %692 = vmatprep.subr.bf16.mxu0 %v582
      %693 = vmatpush1.bf16.msra.mxu0 %v581
      %694 = vmatprep.subr.bf16.mxu0 %v584
      %695 = vmatpush1.bf16.msra.mxu0 %v583
      %696 = vmatprep.subr.bf16.mxu0 %v586
      %697 = vmatpush1.bf16.msra.mxu0 %v585
      %698 = vmatprep.mubr.bf16.mxu0 %v665
      %699 = vmatmul.mubr.bf16.gmra.mrb[0].mxu0 %v664
      %v700 = vpop.f32.mrb[0].mxu0
      %v701 = vadd.f32 0.0, %v700
      %v702 = vpop.f32.mrb[0].mxu0
      %v703 = vadd.f32 0.0, %v702
      %v704 = vpop.f32.mrb[0].mxu0
      %v705 = vpop.f32.mrb[0].mxu0
      %706 = vdwg.mxu0
      %v707 = vadd.f32 %v409, %v701
      %v708 = vadd.f32 %v411, %v703
      %v709 = vtanh.pop %v707
      %v710 = vtanh.pop %v708
      %v711 = vpack.c.bf16 %v709, %v709
      %v712 = vpack.c.bf16 %v710, %v710
      %713 = vmatprep.subr.bf16.mxu0 %v556
      %714 = vmatpush1.bf16.msra.mxu0 %v555
      %715 = vmatprep.subr.bf16.mxu0 %v558
      %716 = vmatpush1.bf16.msra.mxu0 %v557
      %717 = vmatprep.subr.bf16.mxu0 %v560
      %718 = vmatpush1.bf16.msra.mxu0 %v559
      %719 = vmatprep.subr.bf16.mxu0 %v562
      %720 = vmatpush1.bf16.msra.mxu0 %v561
      %721 = vmatprep.subr.bf16.mxu0 %v564
      %722 = vmatpush1.bf16.msra.mxu0 %v563
      %723 = vmatprep.subr.bf16.mxu0 %v566
      %724 = vmatpush1.bf16.msra.mxu0 %v565
      %725 = vmatprep.subr.bf16.mxu0 %v568
      %726 = vmatpush1.bf16.msra.mxu0 %v567
      %727 = vmatprep.subr.bf16.mxu0 %v570
      %728 = vmatpush1.bf16.msra.mxu0 %v569
      %729 = vmatprep.subr.bf16.mxu0 %v572
      %730 = vmatpush1.bf16.msra.mxu0 %v571
      %731 = vmatprep.subr.bf16.mxu0 %v574
      %732 = vmatpush1.bf16.msra.mxu0 %v573
      %733 = vmatprep.subr.bf16.mxu0 %v576
      %734 = vmatpush1.bf16.msra.mxu0 %v575
      %735 = vmatprep.subr.bf16.mxu0 %v578
      %736 = vmatpush1.bf16.msra.mxu0 %v577
      %737 = vmatprep.subr.bf16.mxu0 %v580
      %738 = vmatpush1.bf16.msra.mxu0 %v579
      %739 = vmatprep.subr.bf16.mxu0 %v582
      %740 = vmatpush1.bf16.msra.mxu0 %v581
      %741 = vmatprep.subr.bf16.mxu0 %v584
      %742 = vmatpush1.bf16.msra.mxu0 %v583
      %743 = vmatprep.subr.bf16.mxu0 %v586
      %744 = vmatpush1.bf16.msra.mxu0 %v585
      %745 = vmatprep.mubr.bf16.mxu0 %v712
      %746 = vmatmul.mubr.bf16.gmra.mrb[0].mxu0 %v711
      %v747 = vpop.f32.mrb[0].mxu0
      %v748 = vadd.f32 0.0, %v747
      %v749 = vpop.f32.mrb[0].mxu0
      %v750 = vadd.f32 0.0, %v749
      %v751 = vpop.f32.mrb[0].mxu0
      %v752 = vpop.f32.mrb[0].mxu0
      %753 = vdwg.mxu0
      %v754 = vadd.f32 %v415, %v748
      %v755 = vadd.f32 %v417, %v750
      %v756 = vtanh.pop %v754
      %v757 = vtanh.pop %v755
      %v758 = vpack.c.bf16 %v756, %v756
      %v759 = vpack.c.bf16 %v757, %v757
      %760 = vmatprep.subr.bf16.mxu0 %v556
      %761 = vmatpush1.bf16.msra.mxu0 %v555
      %762 = vmatprep.subr.bf16.mxu0 %v558
      %763 = vmatpush1.bf16.msra.mxu0 %v557
      %764 = vmatprep.subr.bf16.mxu0 %v560
      %765 = vmatpush1.bf16.msra.mxu0 %v559
      %766 = vmatprep.subr.bf16.mxu0 %v562
      %767 = vmatpush1.bf16.msra.mxu0 %v561
      %768 = vmatprep.subr.bf16.mxu0 %v564
      %769 = vmatpush1.bf16.msra.mxu0 %v563
      %770 = vmatprep.subr.bf16.mxu0 %v566
      %771 = vmatpush1.bf16.msra.mxu0 %v565
      %772 = vmatprep.subr.bf16.mxu0 %v568
      %773 = vmatpush1.bf16.msra.mxu0 %v567
      %774 = vmatprep.subr.bf16.mxu0 %v570
      %775 = vmatpush1.bf16.msra.mxu0 %v569
      %776 = vmatprep.subr.bf16.mxu0 %v572
      %777 = vmatpush1.bf16.msra.mxu0 %v571
      %778 = vmatprep.subr.bf16.mxu0 %v574
      %779 = vmatpush1.bf16.msra.mxu0 %v573
      %780 = vmatprep.subr.bf16.mxu0 %v576
      %781 = vmatpush1.bf16.msra.mxu0 %v575
      %782 = vmatprep.subr.bf16.mxu0 %v578
      %783 = vmatpush1.bf16.msra.mxu0 %v577
      %784 = vmatprep.subr.bf16.mxu0 %v580
      %785 = vmatpush1.bf16.msra.mxu0 %v579
      %786 = vmatprep.subr.bf16.mxu0 %v582
      %787 = vmatpush1.bf16.msra.mxu0 %v581
      %788 = vmatprep.subr.bf16.mxu0 %v584
      %789 = vmatpush1.bf16.msra.mxu0 %v583
      %790 = vmatprep.subr.bf16.mxu0 %v586
      %791 = vmatpush1.bf16.msra.mxu0 %v585
      %792 = vmatprep.mubr.bf16.mxu0 %v759
      %793 = vmatmul.mubr.bf16.gmra.mrb[0].mxu0 %v758
      %v794 = vpop.f32.mrb[0].mxu0
      %v795 = vadd.f32 0.0, %v794
      %v796 = vpop.f32.mrb[0].mxu0
      %v797 = vadd.f32 0.0, %v796
      %v798 = vpop.f32.mrb[0].mxu0
      %v799 = vpop.f32.mrb[0].mxu0
      %800 = vdwg.mxu0
      %v801 = vadd.f32 %v419, %v795
      %v802 = vadd.f32 %v421, %v797
      %v803 = vtanh.pop %v801
      %v804 = vtanh.pop %v802
      %805 = vst [vmem:[#allocation2] sm:$0xff] %v803
      %806 = vst [vmem:[#allocation2 + $0x8] sm:$0xff] %v804
      %p807 = scmp.eq.s32.totalorder %s17, 1
      // Predicated region
      $region49: #{_lambda_.1} parent=43 // pred_check
        %p808 = pneg %p807
      $region50: #{_lambda_.1} parent=43 // pred_check_branch
        %810 = sbr.rel (%p808) target = $region52
      $region51: #{_lambda_.1} parent=43 // pred_region
        %v811 = vpack.c.bf16 %v803, %v803
        %v812 = vpack.c.bf16 %v804, %v804
        %v813 = vld [vmem:[%s4] sm:$0xf]
        %v814 = vld [vmem:[%s4 + $0x4] sm:$0xf]
        %v815 = vld [vmem:[%s4 + $0x8] sm:$0xf]
        %v816 = vld [vmem:[%s4 + $0xc] sm:$0xf]
        %v817 = vld [vmem:[%s4 + $0x10] sm:$0xf]
        %v818 = vld [vmem:[%s4 + $0x14] sm:$0xf]
        %v819 = vld [vmem:[%s4 + $0x18] sm:$0xf]
        %v820 = vld [vmem:[%s4 + $0x1c] sm:$0xf]
        %v821 = vld [vmem:[%s4 + $0x20] sm:$0xf]
        %v822 = vld [vmem:[%s4 + $0x24] sm:$0xf]
        %v823 = vld [vmem:[%s4 + $0x28] sm:$0xf]
        %v824 = vld [vmem:[%s4 + $0x2c] sm:$0xf]
        %v825 = vld [vmem:[%s4 + $0x30] sm:$0xf]
        %v826 = vld [vmem:[%s4 + $0x34] sm:$0xf]
        %v827 = vld [vmem:[%s4 + $0x38] sm:$0xf]
        %v828 = vld [vmem:[%s4 + $0x3c] sm:$0xf]
        %v829 = vld [vmem:[%s4 + $0x40] sm:$0xf]
        %v830 = vld [vmem:[%s4 + $0x44] sm:$0xf]
        %v831 = vld [vmem:[%s4 + $0x48] sm:$0xf]
        %v832 = vld [vmem:[%s4 + $0x4c] sm:$0xf]
        %v833 = vld [vmem:[%s4 + $0x50] sm:$0xf]
        %v834 = vld [vmem:[%s4 + $0x54] sm:$0xf]
        %v835 = vld [vmem:[%s4 + $0x58] sm:$0xf]
        %v836 = vld [vmem:[%s4 + $0x5c] sm:$0xf]
        %v837 = vld [vmem:[%s4 + $0x60] sm:$0xf]
        %v838 = vld [vmem:[%s4 + $0x64] sm:$0xf]
        %v839 = vld [vmem:[%s4 + $0x68] sm:$0xf]
        %v840 = vld [vmem:[%s4 + $0x6c] sm:$0xf]
        %v841 = vld [vmem:[%s4 + $0x70] sm:$0xf]
        %v842 = vld [vmem:[%s4 + $0x74] sm:$0xf]
        %v843 = vld [vmem:[%s4 + $0x78] sm:$0xf]
        %v844 = vld [vmem:[%s4 + $0x7c] sm:$0xf]
        %v845 = vld [vmem:[%s5] sm:$0x1]
        %v847 = vlaneseq
        %v848 = vshrl.u32 %v847, 7
        %v849 = vsub.s32 0, %v848
        %v850 = vrot.slane %v845, %v849
        %v884 = vunpack.c.l.b16 %v813
        %v885 = vunpack.c.l.b16 %v814
        %v886 = vunpack.c.l.b16 %v815
        %v887 = vunpack.c.l.b16 %v816
        %v888 = vunpack.c.l.b16 %v817
        %v889 = vunpack.c.l.b16 %v818
        %v890 = vunpack.c.l.b16 %v819
        %v891 = vunpack.c.l.b16 %v820
        %v892 = vunpack.c.l.b16 %v821
        %v893 = vunpack.c.l.b16 %v822
        %v894 = vunpack.c.l.b16 %v823
        %v895 = vunpack.c.l.b16 %v824
        %v896 = vunpack.c.l.b16 %v825
        %v897 = vunpack.c.l.b16 %v826
        %v898 = vunpack.c.l.b16 %v827
        %v899 = vunpack.c.l.b16 %v828
        %v900 = vunpack.c.l.b16 %v829
        %v901 = vunpack.c.l.b16 %v830
        %v902 = vunpack.c.l.b16 %v831
        %v903 = vunpack.c.l.b16 %v832
        %v904 = vunpack.c.l.b16 %v833
        %v905 = vunpack.c.l.b16 %v834
        %v906 = vunpack.c.l.b16 %v835
        %v907 = vunpack.c.l.b16 %v836
        %v908 = vunpack.c.l.b16 %v837
        %v909 = vunpack.c.l.b16 %v838
        %v910 = vunpack.c.l.b16 %v839
        %v911 = vunpack.c.l.b16 %v840
        %v912 = vunpack.c.l.b16 %v841
        %v913 = vunpack.c.l.b16 %v842
        %v914 = vunpack.c.l.b16 %v843
        %v915 = vunpack.c.l.b16 %v844
        %v916 = vpack.c.b16 %v885, %v884
        %v917 = vpack.c.b16 %v887, %v886
        %v918 = vpack.c.b16 %v889, %v888
        %v919 = vpack.c.b16 %v891, %v890
        %v920 = vpack.c.b16 %v893, %v892
        %v921 = vpack.c.b16 %v895, %v894
        %v922 = vpack.c.b16 %v897, %v896
        %v923 = vpack.c.b16 %v899, %v898
        %v924 = vpack.c.b16 %v901, %v900
        %v925 = vpack.c.b16 %v903, %v902
        %v926 = vpack.c.b16 %v905, %v904
        %v927 = vpack.c.b16 %v907, %v906
        %v928 = vpack.c.b16 %v909, %v908
        %v929 = vpack.c.b16 %v911, %v910
        %v930 = vpack.c.b16 %v913, %v912
        %v931 = vpack.c.b16 %v915, %v914
        %948 = vmatprep.subr.bf16.mxu0 0
        %949 = vmatpush1.bf16.msra.mxu0 %v916
        %950 = vmatprep.subr.bf16.mxu0 0
        %951 = vmatpush1.bf16.msra.mxu0 %v917
        %952 = vmatprep.subr.bf16.mxu0 0
        %953 = vmatpush1.bf16.msra.mxu0 %v918
        %954 = vmatprep.subr.bf16.mxu0 0
        %955 = vmatpush1.bf16.msra.mxu0 %v919
        %956 = vmatprep.subr.bf16.mxu0 0
        %957 = vmatpush1.bf16.msra.mxu0 %v920
        %958 = vmatprep.subr.bf16.mxu0 0
        %959 = vmatpush1.bf16.msra.mxu0 %v921
        %960 = vmatprep.subr.bf16.mxu0 0
        %961 = vmatpush1.bf16.msra.mxu0 %v922
        %962 = vmatprep.subr.bf16.mxu0 0
        %963 = vmatpush1.bf16.msra.mxu0 %v923
        %964 = vmatprep.subr.bf16.mxu0 0
        %965 = vmatpush1.bf16.msra.mxu0 %v924
        %966 = vmatprep.subr.bf16.mxu0 0
        %967 = vmatpush1.bf16.msra.mxu0 %v925
        %968 = vmatprep.subr.bf16.mxu0 0
        %969 = vmatpush1.bf16.msra.mxu0 %v926
        %970 = vmatprep.subr.bf16.mxu0 0
        %971 = vmatpush1.bf16.msra.mxu0 %v927
        %972 = vmatprep.subr.bf16.mxu0 0
        %973 = vmatpush1.bf16.msra.mxu0 %v928
        %974 = vmatprep.subr.bf16.mxu0 0
        %975 = vmatpush1.bf16.msra.mxu0 %v929
        %976 = vmatprep.subr.bf16.mxu0 0
        %977 = vmatpush1.bf16.msra.mxu0 %v930
        %978 = vmatprep.subr.bf16.mxu0 0
        %979 = vmatpush1.bf16.msra.mxu0 %v931
        %980 = vmatprep.mubr.bf16.mxu0 %v812
        %981 = vmatmul.mubr.bf16.gmra.mrb[0].mxu0 %v811
        %v982 = vpop.f32.mrb[0].mxu0
        %v983 = vadd.f32 %v850, %v982
        %v984 = vpop.f32.mrb[0].mxu0
        %v985 = vpop.f32.mrb[0].mxu0
        %v986 = vpop.f32.mrb[0].mxu0
        %987 = vdwg.mxu0
        %988 = vst [vmem:[%s6] sm:$0xff] %v983
      $region52: #{_lambda_.1} parent=43 // pred_fallthru
        _
      // Predicated region
      $region53: #{_lambda_.1} parent=43 // pred_check
        %p989 = pneg %p161
      $region54: #{_lambda_.1} parent=43 // pred_check_branch
        %991 = sbr.rel (%p989) target = $region56
      $region55: #{_lambda_.1} parent=43 // pred_region
        _
      $region56: #{_lambda_.1} parent=43 // pred_fallthru
        _
      // Predicated region
      $region57: #{_lambda_.1} parent=43 // pred_check
        %p992 = pneg %p161
      $region58: #{_lambda_.1} parent=43 // pred_check_branch
        %994 = sbr.rel (%p992) target = $region60
      $region59: #{_lambda_.1} parent=43 // pred_region
        _
      $region60: #{_lambda_.1} parent=43 // pred_fallthru
        _
    $region44: #{_lambda_.1} parent=5 // pred_fallthru
      _
    %p995 = scmp.le.s32.totalorder 2, %s12
    // Predicated region
    $region61: #{_lambda_.1} parent=5 // pred_check
      %p996 = pneg %p995
    $region62: #{_lambda_.1} parent=5 // pred_check_branch
      %998 = sbr.rel (%p996) target = $region64
    $region63: #{_lambda_.1} parent=5 // pred_region
      %s999 = ssub.s32 %s12, 2
    $region64: #{_lambda_.1} parent=5 // pred_fallthru
      _
  $region6: #{_lambda_.1} parent=0 // loop_footer
    %s16 = sadd.s32 1, %s12
  $region7: #{_lambda_.1} parent=0 // loop_footer_branch
    %11 = sbr.rel target = $region3
  $region8: #{_lambda_.1} parent=0 // loop_exit
    _

</llo_original>
